<compile_context>
chip_gen: v6e
topology: v6e:2x2x1
jax: 0.10.0
libtpu: 0.0.40
codegen_flags: <defaults>
</compile_context>

<pallas_src>
import functools
import math

import jax
import jax.numpy as jnp
from jax import lax
from jax.experimental import pallas as pl
from jax.experimental.pallas import tpu as pltpu


def _roundup(x, m):
    return ((x + m - 1) // m) * m


def _mlp_kernel(x_ref, w1_ref, b1_ref, w2_ref, b2_ref, w3_ref, b3_ref, o_ref,
                *, sub_b, n_sub):
    """One grid step: (3, tile_b) feature-major tile -> (3, tile_b) logits tile.

    The tile is processed in sub_b-column sub-chunks so the (32,.)/(16,.)
    intermediates stay small no matter how large the DMA tile is.
    """
    # Resident weights/biases (constant-index blocks): load once per grid step;
    # hoist the bias broadcasts out of the sub-chunk loop.
    w1 = w1_ref[...]                                                     # (32, 3)
    w2 = w2_ref[...]                                                     # (16, 32)
    w3 = w3_ref[...]                                                     # (3, 16)
    b1 = jnp.broadcast_to(b1_ref[...], (w1.shape[0], sub_b))
    b2 = jnp.broadcast_to(b2_ref[...], (w2.shape[0], sub_b))
    b3 = jnp.broadcast_to(b3_ref[...], (w3.shape[0], sub_b))

    def body(c, carry):
        off = pl.multiple_of(c * sub_b, 128)
        x = x_ref[:, pl.ds(off, sub_b)]                                  # (3, sub_b)
        h1 = jnp.maximum(
            jnp.dot(w1, x, preferred_element_type=jnp.float32) + b1, 0.0)   # (32, sub_b)
        h2 = jnp.maximum(
            jnp.dot(w2, h1, preferred_element_type=jnp.float32) + b2, 0.0)  # (16, sub_b)
        out = jnp.dot(w3, h2, preferred_element_type=jnp.float32) + b3      # (3, sub_b)
        o_ref[:, pl.ds(off, sub_b)] = out.astype(o_ref.dtype)
        return carry

    lax.fori_loop(0, n_sub, body, 0)


def _forward_feature_major(xt, params, tile_b, sub_b, vmem_limit_bytes):
    """Core Pallas path. xt: (3, B) float32 -> (3, B) float32 logits."""
    F, B = xt.shape
    assert F == 3, f"expected 3 features, got {F}"

    # --- tile-size selection --------------------------------------------------
    sub_b = max(128, (int(sub_b) // 128) * 128)
    b_ceil = _roundup(B, 128)
    sub_b = min(sub_b, b_ceil)
    tile_b = max(sub_b, (int(tile_b) // sub_b) * sub_b)
    tile_b = min(tile_b, _roundup(b_ceil, sub_b))
    # Guarantee >= 2 grid steps when there is enough work so the "parallel"
    # axis shards across both TensorCores on v7x.
    if _roundup(b_ceil, sub_b) >= 2 * sub_b:
        tile_b = min(tile_b, _roundup(-(-b_ceil // 2), sub_b))
    # Rebalance the tile over the resulting step count (less padding waste).
    n_steps = -(-b_ceil // tile_b)
    tile_b = _roundup(-(-b_ceil // n_steps), sub_b)
    b_pad = n_steps * tile_b
    n_sub = tile_b // sub_b

    # --- VMEM budget (generation-aware) ----------------------------------------
    if vmem_limit_bytes is None:
        # Double-buffered x/out tiles (sublane-padded 3->8) + sub-chunk temporaries.
        need = 2 * 2 * 8 * tile_b * 4 + 72 * sub_b * 4 + (1 << 20)
        if need > 28 * (1 << 20):
            # Cap at 48 MiB: safe inside v7x's 64 MiB physical VMEM; v5e/v6e
            # (128 MiB) callers may pass a larger explicit limit for huge tiles.
            vmem_limit_bytes = int(min(need, 48 * (1 << 20)))

    if b_pad != B:
        xt = jnp.pad(xt, ((0, 0), (0, b_pad - B)))   # padded cols sliced off below

    w1, b1 = params["w1"], params["b1"]
    w2, b2 = params["w2"], params["b2"]
    w3, b3 = params["w3"], params["b3"]

    # Resident (constant-index) weight/bias blocks, kept in VMEM across the grid.
    # TODO(synk): pipeline_mode=pl.Buffered(1) would drop their redundant second
    # buffer (a few KB); omitted to keep lowering maximally portable.
    full = lambda a: pl.BlockSpec(a.shape, lambda i: (0, 0))

    extra = {} if vmem_limit_bytes is None else {
        "vmem_limit_bytes": int(vmem_limit_bytes)}

    out_t = pl.pallas_call(
        functools.partial(_mlp_kernel, sub_b=sub_b, n_sub=n_sub),
        out_shape=jax.ShapeDtypeStruct((3, b_pad), xt.dtype),
        grid_spec=pltpu.PrefetchScalarGridSpec(
            num_scalar_prefetch=0,
            grid=(n_steps,),
            in_specs=[
                pl.BlockSpec((3, tile_b), lambda i: (0, i)),   # x tile (lane-dense)
                full(w1), full(b1),
                full(w2), full(b2),
                full(w3), full(b3),
            ],
            out_specs=pl.BlockSpec((3, tile_b), lambda i: (0, i)),
        ),
        compiler_params=pltpu.CompilerParams(
            dimension_semantics=("parallel",), **extra),
    )(xt, w1, b1, w2, b2, w3, b3)

    if b_pad != B:
        out_t = out_t[:, :B]
    return out_t


@functools.partial(jax.jit,
                   static_argnames=("tile_b", "sub_b", "vmem_limit_bytes"))
def multiclass_risk_model_feature_major(xt, params, *, tile_b=65536, sub_b=2048,
                                        vmem_limit_bytes=None):
    """Feature-major boundary: xt (3, B) -> (3, B) logits. No out-of-kernel copies."""
    return _forward_feature_major(xt, params, tile_b, sub_b, vmem_limit_bytes)


@functools.partial(jax.jit,
                   static_argnames=("tile_b", "sub_b", "min_pallas_batch",
                                    "vmem_limit_bytes"))
def multiclass_risk_model(x, params, *, tile_b=65536, sub_b=2048,
                          min_pallas_batch=4096, vmem_limit_bytes=None):
    """PyTorch-equivalent forward: x (B, 3) float32 -> (B, 3) logits.

    jit'd so the (B,3)<->(3,B) relayout and the batch padding fuse into one copy
    pass on each side of the kernel. Tiny batches use a fused pure-XLA path.
    """
    B, F = x.shape
    assert F == 3
    if B < min_pallas_batch:
        # Fixed pallas_call cost dominates at tiny B: stay in XLA.
        h = jnp.maximum(x @ params["w1"].T + params["b1"].T, 0.0)
        h = jnp.maximum(h @ params["w2"].T + params["b2"].T, 0.0)
        return h @ params["w3"].T + params["b3"].T
    out_t = _forward_feature_major(jnp.transpose(x), params, tile_b, sub_b,
                                   vmem_limit_bytes)
    return jnp.transpose(out_t)


def init_params(key):
    """PyTorch nn.Linear-style init (uniform +/- 1/sqrt(fan_in)), (out, in) layout."""
    dims = [(3, 32), (32, 16), (16, 3)]                 # (fan_in, fan_out)
    params = {}
    keys = jax.random.split(key, 2 * len(dims))
    for idx, (fan_in, fan_out) in enumerate(dims):
        bound = 1.0 / math.sqrt(fan_in)
        params[f"w{idx + 1}"] = jax.random.uniform(
            keys[2 * idx], (fan_out, fan_in), jnp.float32, -bound, bound)
        params[f"b{idx + 1}"] = jax.random.uniform(
            keys[2 * idx + 1], (fan_out, 1), jnp.float32, -bound, bound)
    return params


def reference_forward(x, params):
    h = jnp.maximum(x @ params["w1"].T + params["b1"].T, 0.0)
    h = jnp.maximum(h @ params["w2"].T + params["b2"].T, 0.0)
    return h @ params["w3"].T + params["b3"].T


if __name__ == "__main__":
    key = jax.random.PRNGKey(0)
    pkey, k1, k2, k3 = jax.random.split(key, 4)
    params = init_params(pkey)

    # 1) Module-implied small shape (batch=8, features=3); force the Pallas path.
    x = jax.random.normal(k1, (8, 3), dtype=jnp.float32)
    out = jax.block_until_ready(multiclass_risk_model(x, params, min_pallas_batch=0))
    ref = reference_forward(x, params)
    assert out.shape == (8, 3)
    assert jnp.allclose(out, ref, atol=1e-5, rtol=1e-5), "mismatch (B=8, pallas)"

    # 2) Padding + multi-tile + multi-sub-chunk path (2 grid steps x 2 sub-chunks).
    x2 = jax.random.normal(k2, (300, 3), dtype=jnp.float32)
    out2 = jax.block_until_ready(
        multiclass_risk_model(x2, params, min_pallas_batch=0, tile_b=256, sub_b=128))
    ref2 = reference_forward(x2, params)
    assert out2.shape == (300, 3)
    assert jnp.allclose(out2, ref2, atol=1e-5, rtol=1e-5), "mismatch (B=300, pallas)"

    # 3) Feature-major boundary (zero out-of-kernel layout copies).
    x3t = jax.random.normal(k3, (3, 640), dtype=jnp.float32)
    out3t = jax.block_until_ready(
        multiclass_risk_model_feature_major(x3t, params, tile_b=256, sub_b=128))
    ref3t = jnp.transpose(reference_forward(jnp.transpose(x3t), params))
    assert out3t.shape == (3, 640)
    assert jnp.allclose(out3t, ref3t, atol=1e-5, rtol=1e-5), "mismatch (feature-major)"

    # 4) Small-batch XLA fallback (default min_pallas_batch).
    out4 = jax.block_until_ready(multiclass_risk_model(x, params))
    assert jnp.allclose(out4, ref, atol=1e-5, rtol=1e-5), "mismatch (XLA fallback)"

    print("KERNEL_OK")
</pallas_src>

<mosaic_0001>
module attributes {stable_mosaic.version = 11 : i64} {
  func.func @_mlp_kernel(%arg0: i32, %arg1: memref<3x128xf32, #tpu.memory_space<vmem>>, %arg2: memref<32x3xf32, #tpu.memory_space<vmem>>, %arg3: memref<32x1xf32, #tpu.memory_space<vmem>>, %arg4: memref<16x32xf32, #tpu.memory_space<vmem>>, %arg5: memref<16x1xf32, #tpu.memory_space<vmem>>, %arg6: memref<3x16xf32, #tpu.memory_space<vmem>>, %arg7: memref<3x1xf32, #tpu.memory_space<vmem>>, %arg8: memref<3x128xf32, #tpu.memory_space<vmem>>) attributes {dimension_semantics = [#tpu.dimension_semantics<parallel>], iteration_bounds = array<i64: 1>, scalar_prefetch = 0 : i64, scratch_operands = 0 : i64, tpu.core_type = #tpu.core_type<tc>, window_params = [{transform_indices = @transform_0, window_bounds = array<i64: 3, 128>}, {pipeline_mode = #tpu.pipeline_mode<synchronous>, transform_indices = @transform_1, window_bounds = array<i64: 32, 3>}, {pipeline_mode = #tpu.pipeline_mode<synchronous>, transform_indices = @transform_2, window_bounds = array<i64: 32, 1>}, {pipeline_mode = #tpu.pipeline_mode<synchronous>, transform_indices = @transform_3, window_bounds = array<i64: 16, 32>}, {pipeline_mode = #tpu.pipeline_mode<synchronous>, transform_indices = @transform_4, window_bounds = array<i64: 16, 1>}, {pipeline_mode = #tpu.pipeline_mode<synchronous>, transform_indices = @transform_5, window_bounds = array<i64: 3, 16>}, {pipeline_mode = #tpu.pipeline_mode<synchronous>, transform_indices = @transform_6, window_bounds = array<i64: 3, 1>}, {transform_indices = @transform_7, window_bounds = array<i64: 3, 128>}]} {
    %c0 = arith.constant 0 : index
    %c0_0 = arith.constant 0 : index
    %0 = vector.load %arg2[%c0, %c0_0] : memref<32x3xf32, #tpu.memory_space<vmem>>, vector<32x3xf32>
    %c0_1 = arith.constant 0 : index
    %c0_2 = arith.constant 0 : index
    %1 = vector.load %arg4[%c0_1, %c0_2] : memref<16x32xf32, #tpu.memory_space<vmem>>, vector<16x32xf32>
    %c0_3 = arith.constant 0 : index
    %c0_4 = arith.constant 0 : index
    %2 = vector.load %arg6[%c0_3, %c0_4] : memref<3x16xf32, #tpu.memory_space<vmem>>, vector<3x16xf32>
    %c0_5 = arith.constant 0 : index
    %c0_6 = arith.constant 0 : index
    %3 = vector.load %arg3[%c0_5, %c0_6] : memref<32x1xf32, #tpu.memory_space<vmem>>, vector<32x1xf32>
    %4 = vector.shape_cast %3 : vector<32x1xf32> to vector<32x1xf32>
    %5 = vector.broadcast %4 : vector<32x1xf32> to vector<32x128xf32>
    %c0_7 = arith.constant 0 : index
    %c0_8 = arith.constant 0 : index
    %6 = vector.load %arg5[%c0_7, %c0_8] : memref<16x1xf32, #tpu.memory_space<vmem>>, vector<16x1xf32>
    %7 = vector.shape_cast %6 : vector<16x1xf32> to vector<16x1xf32>
    %8 = vector.broadcast %7 : vector<16x1xf32> to vector<16x128xf32>
    %c0_9 = arith.constant 0 : index
    %c0_10 = arith.constant 0 : index
    %9 = vector.load %arg7[%c0_9, %c0_10] : memref<3x1xf32, #tpu.memory_space<vmem>>, vector<3x1xf32>
    %10 = vector.shape_cast %9 : vector<3x1xf32> to vector<3x1xf32>
    %11 = vector.broadcast %10 : vector<3x1xf32> to vector<3x128xf32>
    %c0_i32 = arith.constant 0 : i32
    %c128_i32 = arith.constant 128 : i32
    %12 = arith.muli %c0_i32, %c128_i32 : i32
    %13 = tpu.assume_multiple %12, 128 : i32
    %c0_11 = arith.constant 0 : index
    %14 = arith.index_cast %13 : i32 to index
    %15 = vector.load %arg1[%c0_11, %14] : memref<3x128xf32, #tpu.memory_space<vmem>>, vector<3x128xf32>
    %cst = arith.constant dense<0.000000e+00> : vector<32x128xf32>
    %16 = tpu.matmul %0, %15, %cst {dimension_numbers = #tpu.dot_dimension_numbers<[1], [0], [0], [1], [0, 0, 1, 1], [], []>} : vector<32x3xf32>, vector<3x128xf32>, vector<32x128xf32> -> vector<32x128xf32>
    %17 = arith.addf %16, %5 : vector<32x128xf32>
    %cst_12 = arith.constant 0.000000e+00 : f32
    %18 = vector.broadcast %cst_12 : f32 to vector<32x128xf32>
    %19 = arith.maximumf %17, %18 : vector<32x128xf32>
    %cst_13 = arith.constant dense<0.000000e+00> : vector<16x128xf32>
    %20 = tpu.matmul %1, %19, %cst_13 {dimension_numbers = #tpu.dot_dimension_numbers<[1], [0], [0], [1], [0, 0, 1, 1], [], []>} : vector<16x32xf32>, vector<32x128xf32>, vector<16x128xf32> -> vector<16x128xf32>
    %21 = arith.addf %20, %8 : vector<16x128xf32>
    %cst_14 = arith.constant 0.000000e+00 : f32
    %22 = vector.broadcast %cst_14 : f32 to vector<16x128xf32>
    %23 = arith.maximumf %21, %22 : vector<16x128xf32>
    %cst_15 = arith.constant dense<0.000000e+00> : vector<3x128xf32>
    %24 = tpu.matmul %2, %23, %cst_15 {dimension_numbers = #tpu.dot_dimension_numbers<[1], [0], [0], [1], [0, 0, 1, 1], [], []>} : vector<3x16xf32>, vector<16x128xf32>, vector<3x128xf32> -> vector<3x128xf32>
    %25 = arith.addf %24, %11 : vector<3x128xf32>
    %c0_16 = arith.constant 0 : index
    %26 = arith.index_cast %13 : i32 to index
    %27 = vector.load %arg8[%c0_16, %26] : memref<3x128xf32, #tpu.memory_space<vmem>>, vector<3x128xf32>
    tpu.vector_store %arg8[%c0_16, %26], %25 {strides = array<i32>} : memref<3x128xf32, #tpu.memory_space<vmem>>, vector<3x128xf32>,
    %c1_i32 = arith.constant 1 : i32
    return
  }
  func.func @transform_0(%arg0: i32) -> (i32, i32) {
    %c0_i32 = arith.constant 0 : i32
    %c0_i32_0 = arith.constant 0 : i32
    return %c0_i32, %arg0 : i32, i32
  }
  func.func @transform_1(%arg0: i32) -> (i32, i32) {
    %c0_i32 = arith.constant 0 : i32
    %c0_i32_0 = arith.constant 0 : i32
    %c0_i32_1 = arith.constant 0 : i32
    return %c0_i32, %c0_i32_0 : i32, i32
  }
  func.func @transform_2(%arg0: i32) -> (i32, i32) {
    %c0_i32 = arith.constant 0 : i32
    %c0_i32_0 = arith.constant 0 : i32
    %c0_i32_1 = arith.constant 0 : i32
    return %c0_i32, %c0_i32_0 : i32, i32
  }
  func.func @transform_3(%arg0: i32) -> (i32, i32) {
    %c0_i32 = arith.constant 0 : i32
    %c0_i32_0 = arith.constant 0 : i32
    %c0_i32_1 = arith.constant 0 : i32
    return %c0_i32, %c0_i32_0 : i32, i32
  }
  func.func @transform_4(%arg0: i32) -> (i32, i32) {
    %c0_i32 = arith.constant 0 : i32
    %c0_i32_0 = arith.constant 0 : i32
    %c0_i32_1 = arith.constant 0 : i32
    return %c0_i32, %c0_i32_0 : i32, i32
  }
  func.func @transform_5(%arg0: i32) -> (i32, i32) {
    %c0_i32 = arith.constant 0 : i32
    %c0_i32_0 = arith.constant 0 : i32
    %c0_i32_1 = arith.constant 0 : i32
    return %c0_i32, %c0_i32_0 : i32, i32
  }
  func.func @transform_6(%arg0: i32) -> (i32, i32) {
    %c0_i32 = arith.constant 0 : i32
    %c0_i32_0 = arith.constant 0 : i32
    %c0_i32_1 = arith.constant 0 : i32
    return %c0_i32, %c0_i32_0 : i32, i32
  }
  func.func @transform_7(%arg0: i32) -> (i32, i32) {
    %c0_i32 = arith.constant 0 : i32
    %c0_i32_0 = arith.constant 0 : i32
    return %c0_i32, %arg0 : i32, i32
  }
}

</mosaic_0001>

<llo_original>
// kernel: multiclass_risk_model.1
$region0: #{multiclass_risk_model.1}
  #allocation0 [shape = 'u32[]', space=smem, size = 0x4, offset = 0x4, fixed_abs, tag = 'smem constant byte address 0x4 - core index']
  #allocation1 [shape = 'u32[144,128]{1,0:T(1,128)}', space=vmem, size = 0x12000, scoped, tag = 'internal scratch']
  %s0 = inlined_call_operand.vmem [shape: f32[3,128], index: 0, kind: input, shape index: {}]
  %s1 = inlined_call_operand.vmem [shape: f32[32,3], index: 1, kind: input, shape index: {}]
  %s2 = inlined_call_operand.vmem [shape: f32[32,1], index: 2, kind: input, shape index: {}]
  %s3 = inlined_call_operand.vmem [shape: f32[16,32], index: 3, kind: input, shape index: {}]
  %s4 = inlined_call_operand.vmem [shape: f32[16,1], index: 4, kind: input, shape index: {}]
  %s5 = inlined_call_operand.vmem [shape: f32[3,16], index: 5, kind: input, shape index: {}]
  %s6 = inlined_call_operand.vmem [shape: f32[3,1], index: 6, kind: input, shape index: {}]
  %s7 = inlined_call_operand.vmem [shape: f32[3,128], index: 7, kind: output, shape index: {}]
  %s8 = sld [smem:[#allocation0]]
  $region38: #{multiclass_risk_model.1} parent=0
    _
  %s10 = ssub.s32 1, %s8
  %s11 = scalar_select 0, %s10, %s8
  // Predicated region
  $region2: #{multiclass_risk_model.1} parent=0 // pred_check
    _
  $region3: #{multiclass_risk_model.1} parent=0 // pred_check_branch
    %13 = sbr.rel (0) target = $region5
  $region4: #{multiclass_risk_model.1} parent=0 // pred_region
    _
  $region5: #{multiclass_risk_model.1} parent=0 // pred_fallthru
    _
  // Predicated region
  $region6: #{multiclass_risk_model.1} parent=0 // pred_check
    _
  $region7: #{multiclass_risk_model.1} parent=0 // pred_check_branch
    %15 = sbr.rel (0) target = $region9
  $region8: #{multiclass_risk_model.1} parent=0 // pred_region
    _
  $region9: #{multiclass_risk_model.1} parent=0 // pred_fallthru
    _
  // Predicated region
  $region10: #{multiclass_risk_model.1} parent=0 // pred_check
    _
  $region11: #{multiclass_risk_model.1} parent=0 // pred_check_branch
    %17 = sbr.rel (0) target = $region13
  $region12: #{multiclass_risk_model.1} parent=0 // pred_region
    _
  $region13: #{multiclass_risk_model.1} parent=0 // pred_fallthru
    _
  // Predicated region
  $region14: #{multiclass_risk_model.1} parent=0 // pred_check
    _
  $region15: #{multiclass_risk_model.1} parent=0 // pred_check_branch
    %19 = sbr.rel (0) target = $region17
  $region16: #{multiclass_risk_model.1} parent=0 // pred_region
    _
  $region17: #{multiclass_risk_model.1} parent=0 // pred_fallthru
    _
  // Predicated region
  $region18: #{multiclass_risk_model.1} parent=0 // pred_check
    _
  $region19: #{multiclass_risk_model.1} parent=0 // pred_check_branch
    %21 = sbr.rel (0) target = $region21
  $region20: #{multiclass_risk_model.1} parent=0 // pred_region
    _
  $region21: #{multiclass_risk_model.1} parent=0 // pred_fallthru
    _
  // Predicated region
  $region22: #{multiclass_risk_model.1} parent=0 // pred_check
    _
  $region23: #{multiclass_risk_model.1} parent=0 // pred_check_branch
    %23 = sbr.rel (0) target = $region25
  $region24: #{multiclass_risk_model.1} parent=0 // pred_region
    _
  $region25: #{multiclass_risk_model.1} parent=0 // pred_fallthru
    _
  // Predicated region
  $region26: #{multiclass_risk_model.1} parent=0 // pred_check
    _
  $region27: #{multiclass_risk_model.1} parent=0 // pred_check_branch
    %25 = sbr.rel (0) target = $region29
  $region28: #{multiclass_risk_model.1} parent=0 // pred_region
    _
  $region29: #{multiclass_risk_model.1} parent=0 // pred_fallthru
    _
  %v26 = vld [vmem:[%s1] sm:$0xff]
  %v27 = vld [vmem:[%s1 + $0x8] sm:$0xff]
  %v28 = vld [vmem:[%s1 + $0x10] sm:$0xff]
  %v29 = vld [vmem:[%s1 + $0x18] sm:$0xff]
  %v30 = vld [vmem:[%s3] sm:$0xff]
  %v31 = vld [vmem:[%s3 + $0x8] sm:$0xff]
  %v32 = vld [vmem:[%s5] sm:$0x7]
  %v33 = vld [vmem:[%s2] sm:$0xff]
  %v34 = vld [vmem:[%s2 + $0x8] sm:$0xff]
  %v35 = vld [vmem:[%s2 + $0x10] sm:$0xff]
  %v36 = vld [vmem:[%s2 + $0x18] sm:$0xff]
  %38 = vset.pattern.permute.xlu0 0
  %39 = vperm.xlu0 %38, %v33
  %v40 = vpop.permute.xlu0 %39
  %43 = vset.pattern.permute.xlu0 0
  %44 = vperm.xlu0 %43, %v34
  %v45 = vpop.permute.xlu0 %44
  %48 = vset.pattern.permute.xlu0 0
  %49 = vperm.xlu0 %48, %v35
  %v50 = vpop.permute.xlu0 %49
  %53 = vset.pattern.permute.xlu0 0
  %54 = vperm.xlu0 %53, %v36
  %v55 = vpop.permute.xlu0 %54
  %v57 = vld [vmem:[%s4] sm:$0xff]
  %v58 = vld [vmem:[%s4 + $0x8] sm:$0xff]
  %60 = vset.pattern.permute.xlu0 0
  %61 = vperm.xlu0 %60, %v57
  %v62 = vpop.permute.xlu0 %61
  %65 = vset.pattern.permute.xlu0 0
  %66 = vperm.xlu0 %65, %v58
  %v67 = vpop.permute.xlu0 %66
  %v69 = vld [vmem:[%s6] sm:$0x7]
  %71 = vset.pattern.permute.xlu0 0
  %72 = vperm.xlu0 %71, %v69
  %v73 = vpop.permute.xlu0 %72
  %v75 = vld [vmem:[%s0] sm:$0x7]
  %vm76 = vcmask 23552
  %v78 = vsel %vm76, %v26, 0
  %v81 = vsel %vm76, %v27, 0
  %v84 = vsel %vm76, %v28, 0
  %v87 = vsel %vm76, %v29, 0
  %vm89 = vcmask 1042432
  %v91 = vsel %vm89, %v75, 0
  %93 = vmatprep.subr.mxu0 0.0
  %94 = vmatpush1.msra.mxu0 0.0
  %95 = vmatprep.subr.mxu0 0.0
  %96 = vmatpush1.msra.mxu0 0.0
  %97 = vmatprep.subr.mxu0 0.0
  %98 = vmatpush1.msra.mxu0 0.0
  %99 = vmatprep.subr.mxu0 0.0
  %100 = vmatpush1.msra.mxu0 0.0
  %101 = vmatprep.subr.mxu0 0.0
  %102 = vmatpush1.msra.mxu0 0.0
  %103 = vmatprep.subr.mxu0 0.0
  %104 = vmatpush1.msra.mxu0 0.0
  %105 = vmatprep.subr.mxu0 0.0
  %106 = vmatpush1.msra.mxu0 0.0
  %107 = vmatprep.subr.mxu0 0.0
  %108 = vmatpush1.msra.mxu0 0.0
  %109 = vmatprep.subr.mxu0 0.0
  %110 = vmatpush1.msra.mxu0 0.0
  %111 = vmatprep.subr.mxu0 0.0
  %112 = vmatpush1.msra.mxu0 0.0
  %113 = vmatprep.subr.mxu0 0.0
  %114 = vmatpush1.msra.mxu0 0.0
  %115 = vmatprep.subr.mxu0 0.0
  %116 = vmatpush1.msra.mxu0 0.0
  %117 = vmatprep.subr.mxu0 0.0
  %118 = vmatpush1.msra.mxu0 0.0
  %119 = vmatprep.subr.mxu0 0.0
  %120 = vmatpush1.msra.mxu0 0.0
  %121 = vmatprep.subr.mxu0 0.0
  %122 = vmatpush1.msra.mxu0 0.0
  %123 = vmatprep.subr.mxu0 0.0
  %124 = vmatpush1.msra.mxu0 %v91
  %125 = vmatprep.subr.mxu0 0.0
  %126 = vmatpush2.msra.mxu0 0.0
  %127 = vmatprep.subr.mxu0 0.0
  %128 = vmatpush2.msra.mxu0 0.0
  %129 = vmatprep.subr.mxu0 0.0
  %130 = vmatpush2.msra.mxu0 0.0
  %131 = vmatprep.subr.mxu0 0.0
  %132 = vmatpush2.msra.mxu0 0.0
  %133 = vmatprep.subr.mxu0 0.0
  %134 = vmatpush2.msra.mxu0 0.0
  %135 = vmatprep.subr.mxu0 0.0
  %136 = vmatpush2.msra.mxu0 0.0
  %137 = vmatprep.subr.mxu0 0.0
  %138 = vmatpush2.msra.mxu0 0.0
  %139 = vmatprep.subr.mxu0 0.0
  %140 = vmatpush2.msra.mxu0 0.0
  %141 = vmatprep.subr.mxu0 0.0
  %142 = vmatpush2.msra.mxu0 0.0
  %143 = vmatprep.subr.mxu0 0.0
  %144 = vmatpush2.msra.mxu0 0.0
  %145 = vmatprep.subr.mxu0 0.0
  %146 = vmatpush2.msra.mxu0 0.0
  %147 = vmatprep.subr.mxu0 0.0
  %148 = vmatpush2.msra.mxu0 0.0
  %149 = vmatprep.subr.mxu0 0.0
  %150 = vmatpush2.msra.mxu0 0.0
  %151 = vmatprep.subr.mxu0 0.0
  %152 = vmatpush2.msra.mxu0 0.0
  %153 = vmatprep.subr.mxu0 0.0
  %154 = vmatpush2.msra.mxu0 0.0
  %155 = vmatprep.subr.mxu0 0.0
  %156 = vmatpush2.msra.mxu0 0.0
  %157 = vmatprep.mubr.f32.mxu0 0.0
  %158 = vmatmul.mubr.f32.gmra.mxu0 %v78
  %v159 = vpop.f32.mrf.mxu0
  %v160 = vadd.f32 %v40, %v159
  %v161 = vpop.f32.mrf.mxu0
  %162 = vmatprep.mubr.f32.mxu0 0.0
  %163 = vmatmul.mubr.f32.gmra.mxu0 %v81
  %v164 = vpop.f32.mrf.mxu0
  %v165 = vadd.f32 %v45, %v164
  %v166 = vpop.f32.mrf.mxu0
  %167 = vmatprep.mubr.f32.mxu0 0.0
  %168 = vmatmul.mubr.f32.gmra.mxu0 %v84
  %v169 = vpop.f32.mrf.mxu0
  %v170 = vadd.f32 %v50, %v169
  %v171 = vpop.f32.mrf.mxu0
  %172 = vmatprep.mubr.f32.mxu0 0.0
  %173 = vmatmul.mubr.f32.gmra.mxu0 %v87
  %v174 = vpop.f32.mrf.mxu0
  %v175 = vadd.f32 %v55, %v174
  %v176 = vpop.f32.mrf.mxu0
  %177 = vdwg.mxu0
  %v178 = vmax.f32 %v160, 0.0
  %v179 = vmax.f32 %v165, 0.0
  %v180 = vmax.f32 %v170, 0.0
  %v181 = vmax.f32 %v175, 0.0
  %vm182 = vcmask 261120
  %v184 = vsel %vm182, %v30, 0
  %v187 = vsel %vm182, %v31, 0
  %189 = vmatprep.subr.mxu0 0.0
  %190 = vmatpush1.msra.mxu0 0.0
  %191 = vmatprep.subr.mxu0 0.0
  %192 = vmatpush1.msra.mxu0 0.0
  %193 = vmatprep.subr.mxu0 0.0
  %194 = vmatpush1.msra.mxu0 0.0
  %195 = vmatprep.subr.mxu0 0.0
  %196 = vmatpush1.msra.mxu0 0.0
  %197 = vmatprep.subr.mxu0 0.0
  %198 = vmatpush1.msra.mxu0 0.0
  %199 = vmatprep.subr.mxu0 0.0
  %200 = vmatpush1.msra.mxu0 0.0
  %201 = vmatprep.subr.mxu0 0.0
  %202 = vmatpush1.msra.mxu0 0.0
  %203 = vmatprep.subr.mxu0 0.0
  %204 = vmatpush1.msra.mxu0 0.0
  %205 = vmatprep.subr.mxu0 0.0
  %206 = vmatpush1.msra.mxu0 0.0
  %207 = vmatprep.subr.mxu0 0.0
  %208 = vmatpush1.msra.mxu0 0.0
  %209 = vmatprep.subr.mxu0 0.0
  %210 = vmatpush1.msra.mxu0 0.0
  %211 = vmatprep.subr.mxu0 0.0
  %212 = vmatpush1.msra.mxu0 0.0
  %213 = vmatprep.subr.mxu0 0.0
  %214 = vmatpush1.msra.mxu0 %v181
  %215 = vmatprep.subr.mxu0 0.0
  %216 = vmatpush1.msra.mxu0 %v180
  %217 = vmatprep.subr.mxu0 0.0
  %218 = vmatpush1.msra.mxu0 %v179
  %219 = vmatprep.subr.mxu0 0.0
  %220 = vmatpush1.msra.mxu0 %v178
  %221 = vmatprep.subr.mxu0 0.0
  %222 = vmatpush2.msra.mxu0 0.0
  %223 = vmatprep.subr.mxu0 0.0
  %224 = vmatpush2.msra.mxu0 0.0
  %225 = vmatprep.subr.mxu0 0.0
  %226 = vmatpush2.msra.mxu0 0.0
  %227 = vmatprep.subr.mxu0 0.0
  %228 = vmatpush2.msra.mxu0 0.0
  %229 = vmatprep.subr.mxu0 0.0
  %230 = vmatpush2.msra.mxu0 0.0
  %231 = vmatprep.subr.mxu0 0.0
  %232 = vmatpush2.msra.mxu0 0.0
  %233 = vmatprep.subr.mxu0 0.0
  %234 = vmatpush2.msra.mxu0 0.0
  %235 = vmatprep.subr.mxu0 0.0
  %236 = vmatpush2.msra.mxu0 0.0
  %237 = vmatprep.subr.mxu0 0.0
  %238 = vmatpush2.msra.mxu0 0.0
  %239 = vmatprep.subr.mxu0 0.0
  %240 = vmatpush2.msra.mxu0 0.0
  %241 = vmatprep.subr.mxu0 0.0
  %242 = vmatpush2.msra.mxu0 0.0
  %243 = vmatprep.subr.mxu0 0.0
  %244 = vmatpush2.msra.mxu0 0.0
  %245 = vmatprep.subr.mxu0 0.0
  %246 = vmatpush2.msra.mxu0 0.0
  %247 = vmatprep.subr.mxu0 0.0
  %248 = vmatpush2.msra.mxu0 0.0
  %249 = vmatprep.subr.mxu0 0.0
  %250 = vmatpush2.msra.mxu0 0.0
  %251 = vmatprep.subr.mxu0 0.0
  %252 = vmatpush2.msra.mxu0 0.0
  %253 = vmatprep.mubr.f32.mxu0 0.0
  %254 = vmatmul.mubr.f32.gmra.mxu0 %v184
  %v255 = vpop.f32.mrf.mxu0
  %v256 = vadd.f32 %v62, %v255
  %v257 = vpop.f32.mrf.mxu0
  %258 = vmatprep.mubr.f32.mxu0 0.0
  %259 = vmatmul.mubr.f32.gmra.mxu0 %v187
  %v260 = vpop.f32.mrf.mxu0
  %v261 = vadd.f32 %v67, %v260
  %v262 = vpop.f32.mrf.mxu0
  %263 = vdwg.mxu0
  %v264 = vmax.f32 %v256, 0.0
  %v265 = vmax.f32 %v261, 0.0
  %vm266 = vcmask 130048
  %v268 = vsel %vm266, %v32, 0
  %270 = vmatprep.subr.mxu0 0.0
  %271 = vmatpush1.msra.mxu0 0.0
  %272 = vmatprep.subr.mxu0 0.0
  %273 = vmatpush1.msra.mxu0 0.0
  %274 = vmatprep.subr.mxu0 0.0
  %275 = vmatpush1.msra.mxu0 0.0
  %276 = vmatprep.subr.mxu0 0.0
  %277 = vmatpush1.msra.mxu0 0.0
  %278 = vmatprep.subr.mxu0 0.0
  %279 = vmatpush1.msra.mxu0 0.0
  %280 = vmatprep.subr.mxu0 0.0
  %281 = vmatpush1.msra.mxu0 0.0
  %282 = vmatprep.subr.mxu0 0.0
  %283 = vmatpush1.msra.mxu0 0.0
  %284 = vmatprep.subr.mxu0 0.0
  %285 = vmatpush1.msra.mxu0 0.0
  %286 = vmatprep.subr.mxu0 0.0
  %287 = vmatpush1.msra.mxu0 0.0
  %288 = vmatprep.subr.mxu0 0.0
  %289 = vmatpush1.msra.mxu0 0.0
  %290 = vmatprep.subr.mxu0 0.0
  %291 = vmatpush1.msra.mxu0 0.0
  %292 = vmatprep.subr.mxu0 0.0
  %293 = vmatpush1.msra.mxu0 0.0
  %294 = vmatprep.subr.mxu0 0.0
  %295 = vmatpush1.msra.mxu0 0.0
  %296 = vmatprep.subr.mxu0 0.0
  %297 = vmatpush1.msra.mxu0 0.0
  %298 = vmatprep.subr.mxu0 0.0
  %299 = vmatpush1.msra.mxu0 %v265
  %300 = vmatprep.subr.mxu0 0.0
  %301 = vmatpush1.msra.mxu0 %v264
  %302 = vmatprep.subr.mxu0 0.0
  %303 = vmatpush2.msra.mxu0 0.0
  %304 = vmatprep.subr.mxu0 0.0
  %305 = vmatpush2.msra.mxu0 0.0
  %306 = vmatprep.subr.mxu0 0.0
  %307 = vmatpush2.msra.mxu0 0.0
  %308 = vmatprep.subr.mxu0 0.0
  %309 = vmatpush2.msra.mxu0 0.0
  %310 = vmatprep.subr.mxu0 0.0
  %311 = vmatpush2.msra.mxu0 0.0
  %312 = vmatprep.subr.mxu0 0.0
  %313 = vmatpush2.msra.mxu0 0.0
  %314 = vmatprep.subr.mxu0 0.0
  %315 = vmatpush2.msra.mxu0 0.0
  %316 = vmatprep.subr.mxu0 0.0
  %317 = vmatpush2.msra.mxu0 0.0
  %318 = vmatprep.subr.mxu0 0.0
  %319 = vmatpush2.msra.mxu0 0.0
  %320 = vmatprep.subr.mxu0 0.0
  %321 = vmatpush2.msra.mxu0 0.0
  %322 = vmatprep.subr.mxu0 0.0
  %323 = vmatpush2.msra.mxu0 0.0
  %324 = vmatprep.subr.mxu0 0.0
  %325 = vmatpush2.msra.mxu0 0.0
  %326 = vmatprep.subr.mxu0 0.0
  %327 = vmatpush2.msra.mxu0 0.0
  %328 = vmatprep.subr.mxu0 0.0
  %329 = vmatpush2.msra.mxu0 0.0
  %330 = vmatprep.subr.mxu0 0.0
  %331 = vmatpush2.msra.mxu0 0.0
  %332 = vmatprep.subr.mxu0 0.0
  %333 = vmatpush2.msra.mxu0 0.0
  %334 = vmatprep.mubr.f32.mxu0 0.0
  %335 = vmatmul.mubr.f32.gmra.mxu0 %v268
  %v336 = vpop.f32.mrf.mxu0
  %v337 = vadd.f32 %v73, %v336
  %v338 = vpop.f32.mrf.mxu0
  %339 = vdwg.mxu0
  %340 = vst [vmem:[%s7] sm:$0x7] %v337
  // Predicated region
  $region30: #{multiclass_risk_model.1} parent=0 // pred_check
    _
  $region31: #{multiclass_risk_model.1} parent=0 // pred_check_branch
    %342 = sbr.rel (0) target = $region33
  $region32: #{multiclass_risk_model.1} parent=0 // pred_region
    _
  $region33: #{multiclass_risk_model.1} parent=0 // pred_fallthru
    _
  // Predicated region
  $region34: #{multiclass_risk_model.1} parent=0 // pred_check
    _
  $region35: #{multiclass_risk_model.1} parent=0 // pred_check_branch
    %344 = sbr.rel (0) target = $region37
  $region36: #{multiclass_risk_model.1} parent=0 // pred_region
    _
  $region37: #{multiclass_risk_model.1} parent=0 // pred_fallthru
    _

</llo_original>
